<compile_context>
chip_gen: v7x
topology: tpu7x:2x2x1
jax: 0.10.0
libtpu: 0.0.40
codegen_flags: <defaults>
</compile_context>

<pallas_src>
import numpy as np
import jax
import jax.numpy as jnp
from jax.experimental import pallas as pl
from jax.experimental.pallas import tpu as pltpu


# ------------------------------- Pallas kernel -------------------------------
def make_sublayer_connection_kernel(dropout_p: float, eps: float, d: int,
                                    with_dropout: bool):
    """dropout_p / eps / d / with_dropout are static (baked into the trace)."""
    inv_keep = 1.0 / (1.0 - dropout_p) if dropout_p > 0.0 else 1.0
    # keep iff (bits & 0x7FFFFFFF) >= thresh  ->  P(keep) = 1 - p  (31-bit exact)
    thresh = min(int(round(dropout_p * float(1 << 31))), (1 << 31) - 1)

    def kernel(*refs):
        if with_dropout:
            x_ref, gamma_ref, beta_ref, w_ref, b_ref, bits_ref, o_ref = refs
        else:
            x_ref, gamma_ref, beta_ref, w_ref, b_ref, o_ref = refs

        x = x_ref[...].astype(jnp.float32)                          # (TM, D)

        # ---- LayerNorm (torch .std() semantics: unbiased var, eps added to std)
        mean = jnp.mean(x, axis=-1, keepdims=True)                  # (TM, 1)
        diff = x - mean
        var = jnp.sum(diff * diff, axis=-1, keepdims=True) * (1.0 / (d - 1))
        inv_std = 1.0 / (jnp.sqrt(var) + eps)                       # one divide / row
        normed = (gamma_ref[...].astype(jnp.float32) * (diff * inv_std)
                  + beta_ref[...].astype(jnp.float32))

        # ---- sublayer := Linear(D, D) on the MXU (operands in W's dtype, f32 acc)
        sub = jnp.dot(normed.astype(w_ref.dtype), w_ref[...],
                      preferred_element_type=jnp.float32)           # (TM, D)
        sub = sub + b_ref[...].astype(jnp.float32)

        # ---- dropout (inverted scaling), integer-threshold compare on raw bits
        if with_dropout:
            r = bits_ref[...] & jnp.int32(0x7FFFFFFF)               # 31-bit uniform
            keep = r >= jnp.int32(thresh)
            sub = jnp.where(keep, sub * jnp.float32(inv_keep), 0.0)

        # ---- residual connection (single store in the model dtype)
        o_ref[...] = (x + sub).astype(o_ref.dtype)

    return kernel


# --------------------------------- wrapper ------------------------------------
def sublayer_connection_forward(x, gamma, beta, w, b, *, dropout_p=0.0,
                                eps=1e-6, rng_key=None, row_tile=512):
    """x: (B, S, D);  gamma/beta/b: (D,);  w: (D, D).  Returns (B, S, D) in x.dtype."""
    B, S, D = x.shape
    M = B * S
    out_dtype = x.dtype

    # Row tile: large enough to amortize ~0.35us/step pipeline overhead and feed
    # the MXU a tall LHS, but never larger than the (sublane-padded) problem.
    tm = max(8, min(int(row_tile), ((M + 7) // 8) * 8))
    M_pad = pl.cdiv(M, tm) * tm

    x2 = x.reshape(M, D)
    if M_pad != M:
        x2 = jnp.pad(x2, ((0, M_pad - M), (0, 0)))     # padded rows sliced off below

    gamma2 = gamma.reshape(1, D)
    beta2 = beta.reshape(1, D)
    b2 = b.reshape(1, D)

    with_dropout = float(dropout_p) > 0.0
    inputs = [x2, gamma2, beta2, w, b2]
    in_specs = [
        pl.BlockSpec((tm, D), lambda i: (i, 0)),        # x rows (lane-dense)
        pl.BlockSpec((1, D), lambda i: (0, 0)),         # gamma (resident)
        pl.BlockSpec((1, D), lambda i: (0, 0)),         # beta
        pl.BlockSpec((D, D), lambda i: (0, 0)),         # W (resident)
        pl.BlockSpec((1, D), lambda i: (0, 0)),         # bias
    ]
    if with_dropout:
        if rng_key is None:
            rng_key = jax.random.PRNGKey(0)
        bits = jax.lax.bitcast_convert_type(
            jax.random.bits(rng_key, (M_pad, D), dtype=jnp.uint32), jnp.int32)
        inputs.append(bits)
        in_specs.append(pl.BlockSpec((tm, D), lambda i: (i, 0)))

    kernel = make_sublayer_connection_kernel(float(dropout_p), float(eps), D,
                                             with_dropout)

    x_bytes = int(np.dtype(x2.dtype).itemsize)
    w_bytes = int(np.dtype(w.dtype).itemsize)
    cost = pl.CostEstimate(
        flops=2 * M_pad * D * D + 10 * M_pad * D,
        transcendentals=0,
        bytes_accessed=(2 * M_pad * D * x_bytes + D * D * w_bytes
                        + (4 * M_pad * D if with_dropout else 0) + 3 * 4 * D),
    )

    out2 = pl.pallas_call(
        kernel,
        out_shape=jax.ShapeDtypeStruct((M_pad, D), out_dtype),
        grid=(M_pad // tm,),
        in_specs=in_specs,
        out_specs=pl.BlockSpec((tm, D), lambda i: (i, 0)),
        compiler_params=pltpu.CompilerParams(
            dimension_semantics=("parallel",)),          # v7x: rows split over TCs
        cost_estimate=cost,
    )(*inputs)

    if M_pad != M:
        out2 = out2[:M]
    return out2.reshape(B, S, D)


# -------------------------- pure-numpy reference (f64) ------------------------
def ref_forward_np(x, gamma, beta, w, b, eps):
    x = np.asarray(x, np.float64)
    gamma = np.asarray(gamma, np.float64)
    beta = np.asarray(beta, np.float64)
    w = np.asarray(w, np.float64)
    b = np.asarray(b, np.float64)
    mean = x.mean(-1, keepdims=True)
    var = ((x - mean) ** 2).sum(-1, keepdims=True) / (x.shape[-1] - 1)  # unbiased
    std = np.sqrt(var)
    normed = gamma * (x - mean) / (std + eps) + beta
    return x + (normed @ w + b)


# ----------------------------------- main --------------------------------------
if __name__ == "__main__":
    B, S, D = 2, 8, 128          # batch=2, seq=8, hidden=128 (lane-dense)
    key = jax.random.PRNGKey(0)
    kx, kw, kb, kg, kbe = jax.random.split(key, 5)

    x = jax.random.normal(kx, (B, S, D), dtype=jnp.float32)
    gamma = 1.0 + 0.1 * jax.random.normal(kg, (D,), dtype=jnp.float32)
    beta = 0.05 * jax.random.normal(kbe, (D,), dtype=jnp.float32)
    w = jax.random.normal(kw, (D, D), dtype=jnp.float32) / jnp.sqrt(D)
    b = 0.1 * jax.random.normal(kb, (D,), dtype=jnp.float32)

    # ---- eval mode (dropout = identity): compare against f64 numpy reference
    out = sublayer_connection_forward(x, gamma, beta, w, b, dropout_p=0.0, eps=1e-6)
    out = jax.block_until_ready(out)
    assert out.shape == (B, S, D), out.shape
    ref = ref_forward_np(x, gamma, beta, w, b, 1e-6)
    np.testing.assert_allclose(np.asarray(out), ref, rtol=5e-3, atol=5e-3)

    # ---- train-mode dropout: runs, finite, deterministic for a given key
    kdrop = jax.random.PRNGKey(123)
    out_d1 = jax.block_until_ready(sublayer_connection_forward(
        x, gamma, beta, w, b, dropout_p=0.3, rng_key=kdrop))
    out_d2 = jax.block_until_ready(sublayer_connection_forward(
        x, gamma, beta, w, b, dropout_p=0.3, rng_key=kdrop))
    assert out_d1.shape == (B, S, D)
    assert bool(jnp.all(jnp.isfinite(out_d1)))
    np.testing.assert_array_equal(np.asarray(out_d1), np.asarray(out_d2))

    # ---- bf16 model dtype preserved end-to-end (bf16 HBM streams, bf16 MXU feed)
    xb = x.astype(jnp.bfloat16)
    wb = w.astype(jnp.bfloat16)
    out_b = jax.block_until_ready(sublayer_connection_forward(
        xb, gamma, beta, wb, b, dropout_p=0.0))
    assert out_b.shape == (B, S, D) and out_b.dtype == jnp.bfloat16
    assert bool(jnp.all(jnp.isfinite(out_b.astype(jnp.float32))))

    print("KERNEL_OK")
</pallas_src>

<mosaic_0001>
module attributes {stable_mosaic.version = 11 : i64} {
  func.func @kernel(%arg0: i32, %arg1: memref<16x128xf32, #tpu.memory_space<vmem>>, %arg2: memref<1x128xf32, #tpu.memory_space<vmem>>, %arg3: memref<1x128xf32, #tpu.memory_space<vmem>>, %arg4: memref<128x128xf32, #tpu.memory_space<vmem>>, %arg5: memref<1x128xf32, #tpu.memory_space<vmem>>, %arg6: memref<16x128xf32, #tpu.memory_space<vmem>>) attributes {dimension_semantics = [#tpu.dimension_semantics<parallel>], iteration_bounds = array<i64: 1>, scalar_prefetch = 0 : i64, scratch_operands = 0 : i64, tpu.core_type = #tpu.core_type<tc>, window_params = [{transform_indices = @transform_0, window_bounds = array<i64: 16, 128>}, {pipeline_mode = #tpu.pipeline_mode<synchronous>, transform_indices = @transform_1, window_bounds = array<i64: 1, 128>}, {pipeline_mode = #tpu.pipeline_mode<synchronous>, transform_indices = @transform_2, window_bounds = array<i64: 1, 128>}, {pipeline_mode = #tpu.pipeline_mode<synchronous>, transform_indices = @transform_3, window_bounds = array<i64: 128, 128>}, {pipeline_mode = #tpu.pipeline_mode<synchronous>, transform_indices = @transform_4, window_bounds = array<i64: 1, 128>}, {transform_indices = @transform_5, window_bounds = array<i64: 16, 128>}]} {
    %c0 = arith.constant 0 : index
    %c0_0 = arith.constant 0 : index
    %0 = vector.load %arg1[%c0, %c0_0] : memref<16x128xf32, #tpu.memory_space<vmem>>, vector<16x128xf32>
    %cst = arith.constant dense<0.000000e+00> : vector<16xf32>
    %1 = vector.multi_reduction <add>, %0, %cst [1] : vector<16x128xf32> to vector<16xf32>
    %2 = vector.shape_cast %1 : vector<16xf32> to vector<16x1xf32>
    %cst_1 = arith.constant 1.280000e+02 : f32
    %3 = vector.broadcast %cst_1 : f32 to vector<16x1xf32>
    %4 = arith.divf %2, %3 : vector<16x1xf32>
    %5 = vector.broadcast %4 : vector<16x1xf32> to vector<16x128xf32>
    %6 = arith.subf %0, %5 : vector<16x128xf32>
    %7 = arith.mulf %6, %6 : vector<16x128xf32>
    %cst_2 = arith.constant dense<0.000000e+00> : vector<16xf32>
    %8 = vector.multi_reduction <add>, %7, %cst_2 [1] : vector<16x128xf32> to vector<16xf32>
    %9 = vector.shape_cast %8 : vector<16xf32> to vector<16x1xf32>
    %cst_3 = arith.constant 0.00787401571 : f32
    %10 = vector.broadcast %cst_3 : f32 to vector<16x1xf32>
    %11 = arith.mulf %9, %10 : vector<16x1xf32>
    %12 = math.sqrt %11 : vector<16x1xf32>
    %cst_4 = arith.constant 9.99999997E-7 : f32
    %13 = vector.broadcast %cst_4 : f32 to vector<16x1xf32>
    %14 = arith.addf %12, %13 : vector<16x1xf32>
    %cst_5 = arith.constant 1.000000e+00 : f32
    %15 = vector.broadcast %cst_5 : f32 to vector<16x1xf32>
    %16 = arith.divf %15, %14 : vector<16x1xf32>
    %c0_6 = arith.constant 0 : index
    %c0_7 = arith.constant 0 : index
    %17 = vector.load %arg2[%c0_6, %c0_7] : memref<1x128xf32, #tpu.memory_space<vmem>>, vector<1x128xf32>
    %18 = vector.broadcast %16 : vector<16x1xf32> to vector<16x128xf32>
    %19 = arith.mulf %6, %18 : vector<16x128xf32>
    %20 = vector.broadcast %17 : vector<1x128xf32> to vector<16x128xf32>
    %21 = arith.mulf %20, %19 : vector<16x128xf32>
    %c0_8 = arith.constant 0 : index
    %c0_9 = arith.constant 0 : index
    %22 = vector.load %arg3[%c0_8, %c0_9] : memref<1x128xf32, #tpu.memory_space<vmem>>, vector<1x128xf32>
    %23 = vector.broadcast %22 : vector<1x128xf32> to vector<16x128xf32>
    %24 = arith.addf %21, %23 : vector<16x128xf32>
    %c0_10 = arith.constant 0 : index
    %c0_11 = arith.constant 0 : index
    %25 = vector.load %arg4[%c0_10, %c0_11] : memref<128x128xf32, #tpu.memory_space<vmem>>, vector<128x128xf32>
    %cst_12 = arith.constant dense<0.000000e+00> : vector<16x128xf32>
    %26 = tpu.matmul %24, %25, %cst_12 {dimension_numbers = #tpu.dot_dimension_numbers<[1], [0], [0], [1], [0, 0, 1, 1], [], []>} : vector<16x128xf32>, vector<128x128xf32>, vector<16x128xf32> -> vector<16x128xf32>
    %c0_13 = arith.constant 0 : index
    %c0_14 = arith.constant 0 : index
    %27 = vector.load %arg5[%c0_13, %c0_14] : memref<1x128xf32, #tpu.memory_space<vmem>>, vector<1x128xf32>
    %28 = vector.broadcast %27 : vector<1x128xf32> to vector<16x128xf32>
    %29 = arith.addf %26, %28 : vector<16x128xf32>
    %30 = arith.addf %0, %29 : vector<16x128xf32>
    %c0_15 = arith.constant 0 : index
    %c0_16 = arith.constant 0 : index
    %31 = vector.load %arg6[%c0_15, %c0_16] : memref<16x128xf32, #tpu.memory_space<vmem>>, vector<16x128xf32>
    tpu.vector_store %arg6[%c0_15, %c0_16], %30 {strides = array<i32>} : memref<16x128xf32, #tpu.memory_space<vmem>>, vector<16x128xf32>,
    return
  }
  func.func @transform_0(%arg0: i32) -> (i32, i32) {
    %c0_i32 = arith.constant 0 : i32
    %c0_i32_0 = arith.constant 0 : i32
    return %arg0, %c0_i32 : i32, i32
  }
  func.func @transform_1(%arg0: i32) -> (i32, i32) {
    %c0_i32 = arith.constant 0 : i32
    %c0_i32_0 = arith.constant 0 : i32
    %c0_i32_1 = arith.constant 0 : i32
    return %c0_i32, %c0_i32_0 : i32, i32
  }
  func.func @transform_2(%arg0: i32) -> (i32, i32) {
    %c0_i32 = arith.constant 0 : i32
    %c0_i32_0 = arith.constant 0 : i32
    %c0_i32_1 = arith.constant 0 : i32
    return %c0_i32, %c0_i32_0 : i32, i32
  }
  func.func @transform_3(%arg0: i32) -> (i32, i32) {
    %c0_i32 = arith.constant 0 : i32
    %c0_i32_0 = arith.constant 0 : i32
    %c0_i32_1 = arith.constant 0 : i32
    return %c0_i32, %c0_i32_0 : i32, i32
  }
  func.func @transform_4(%arg0: i32) -> (i32, i32) {
    %c0_i32 = arith.constant 0 : i32
    %c0_i32_0 = arith.constant 0 : i32
    %c0_i32_1 = arith.constant 0 : i32
    return %c0_i32, %c0_i32_0 : i32, i32
  }
  func.func @transform_5(%arg0: i32) -> (i32, i32) {
    %c0_i32 = arith.constant 0 : i32
    %c0_i32_0 = arith.constant 0 : i32
    return %arg0, %c0_i32 : i32, i32
  }
}

</mosaic_0001>

<llo_original>
// kernel: tpu_custom_call.1
$region0: #{tpu_custom_call.1}
  #allocation0 [shape = 'u32[]', space=smem, size = 0x4, offset = 0x4, fixed_abs, tag = 'smem constant byte address 0x4 - core index']
  #allocation1 [shape = 'u32[144,128]{1,0:T(1,128)}', space=vmem, size = 0x12000, scoped, tag = 'internal scratch']
  %s0 = inlined_call_operand.hbm [shape: f32[16,128], index: 0, kind: input, shape index: {}]
  %s1 = inlined_call_operand.vmem [shape: f32[1,128], index: 1, kind: input, shape index: {}]
  %s2 = inlined_call_operand.vmem [shape: f32[1,128], index: 2, kind: input, shape index: {}]
  %s3 = inlined_call_operand.hbm [shape: f32[128,128], index: 3, kind: input, shape index: {}]
  %s4 = inlined_call_operand.vmem [shape: f32[1,128], index: 4, kind: input, shape index: {}]
  %s5 = inlined_call_operand.hbm [shape: f32[16,128], index: 5, kind: output, shape index: {}]
  %s6 = sld [smem:[#allocation0]]
  $region38: #{tpu_custom_call.1} parent=0
    _
  %s8 = ssub.s32 1, %s6
  %s9 = scalar_select 0, %s8, %s6
  $region1: #{tpu_custom_call.1} parent=0
    #allocation2 [shape = 'u8[8192]{0}', space=vmem, size = 0x2000, scoped, tag = 'input window, operand 0, single buffered']
    #allocation3 [shape = 's32[1]{0}', space=sflag, size = 0x4, scoped, tag = 'scoped memory for tpu_custom_call.1']
    #allocation4 [shape = 's32[1]{0}', space=sflag, size = 0x4, scoped, tag = 'scoped memory for tpu_custom_call.1']
    #allocation5 [shape = 'u8[65536]{0}', space=vmem, size = 0x10000, scoped, tag = 'input window, operand 3, single buffered']
    #allocation6 [shape = 's32[1]{0}', space=sflag, size = 0x4, scoped, tag = 'scoped memory for tpu_custom_call.1']
    #allocation7 [shape = 'u8[8192]{0}', space=vmem, size = 0x2000, scoped, tag = 'output window, operand 0, single buffered']
    %10 = vsyncpa [#allocation3], 0
    %11 = vsyncpa [#allocation6], 0
    %12 = vsyncpa [#allocation4], 0
    // Predicated region
    $region2: #{tpu_custom_call.1} parent=1 // pred_check
      _
    $region3: #{tpu_custom_call.1} parent=1 // pred_check_branch
      %14 = sbr.rel (0) target = $region5
    $region4: #{tpu_custom_call.1} parent=1 // pred_region
      %s16 = ssub.s32 256, 256
      %17 = vsyncadd [#allocation3], %s16
      %s18 = sshll.u32 [#allocation2], 4
      %s19 = int_to_ptr.vmem [resolvable:$true] %s18
      %24 = dma.hbm_to_vmem [thread:$0]  %s0, 256, %s19, [#allocation3], 128, 128, 8
    $region5: #{tpu_custom_call.1} parent=1 // pred_fallthru
      _
    // Predicated region
    $region6: #{tpu_custom_call.1} parent=1 // pred_check
      _
    $region7: #{tpu_custom_call.1} parent=1 // pred_check_branch
      %26 = sbr.rel (0) target = $region9
    $region8: #{tpu_custom_call.1} parent=1 // pred_region
      _
    $region9: #{tpu_custom_call.1} parent=1 // pred_fallthru
      _
    // Predicated region
    $region10: #{tpu_custom_call.1} parent=1 // pred_check
      _
    $region11: #{tpu_custom_call.1} parent=1 // pred_check_branch
      %28 = sbr.rel (0) target = $region13
    $region12: #{tpu_custom_call.1} parent=1 // pred_region
      _
    $region13: #{tpu_custom_call.1} parent=1 // pred_fallthru
      _
    // Predicated region
    $region14: #{tpu_custom_call.1} parent=1 // pred_check
      _
    $region15: #{tpu_custom_call.1} parent=1 // pred_check_branch
      %30 = sbr.rel (0) target = $region17
    $region16: #{tpu_custom_call.1} parent=1 // pred_region
      %s32 = ssub.s32 2048, 2048
      %33 = vsyncadd [#allocation6], %s32
      %s34 = sshll.u32 [#allocation5], 4
      %s35 = int_to_ptr.vmem [resolvable:$true] %s34
      %40 = dma.hbm_to_vmem [thread:$0]  %s3, 2048, %s35, [#allocation6], 128, 128, 8
    $region17: #{tpu_custom_call.1} parent=1 // pred_fallthru
      _
    // Predicated region
    $region18: #{tpu_custom_call.1} parent=1 // pred_check
      _
    $region19: #{tpu_custom_call.1} parent=1 // pred_check_branch
      %42 = sbr.rel (0) target = $region21
    $region20: #{tpu_custom_call.1} parent=1 // pred_region
      _
    $region21: #{tpu_custom_call.1} parent=1 // pred_fallthru
      _
    // Predicated region
    $region22: #{tpu_custom_call.1} parent=1 // pred_check
      _
    $region23: #{tpu_custom_call.1} parent=1 // pred_check_branch
      %44 = sbr.rel (0) target = $region25
    $region24: #{tpu_custom_call.1} parent=1 // pred_region
      %45 = dma.done [#allocation3], 256
    $region25: #{tpu_custom_call.1} parent=1 // pred_fallthru
      _
    // Predicated region
    $region26: #{tpu_custom_call.1} parent=1 // pred_check
      _
    $region27: #{tpu_custom_call.1} parent=1 // pred_check_branch
      %47 = sbr.rel (0) target = $region29
    $region28: #{tpu_custom_call.1} parent=1 // pred_region
      %48 = dma.done [#allocation6], 2048
    $region29: #{tpu_custom_call.1} parent=1 // pred_fallthru
      _
    %v49 = vld [vmem:[#allocation2] sm:$0xff]
    %v50 = vld [vmem:[#allocation2 + $0x8] sm:$0xff]
    %51 = vadd.xlane.f32.xlu0 %v49
    %v52 = vpop.xlane.xlu0 %51
    %53 = vadd.xlane.f32.xlu0 %v50
    %v54 = vpop.xlane.xlu0 %53
    %v55 = vrcp.pop 128.0
    %v56 = vmul.f32 %v52, %v55
    %v57 = vmul.f32 %v54, %v55
    %v58 = vsub.f32 %v49, %v56
    %v59 = vsub.f32 %v50, %v57
    %v60 = vmul.f32 %v58, %v58
    %v61 = vmul.f32 %v59, %v59
    %62 = vadd.xlane.f32.xlu0 %v60
    %v63 = vpop.xlane.xlu0 %62
    %64 = vadd.xlane.f32.xlu0 %v61
    %v65 = vpop.xlane.xlu0 %64
    %v66 = vmul.f32 %v63, 0.007874016
    %v67 = vmul.f32 %v65, 0.007874016
    %v68 = vrsqrt.pop %v66
    %v69 = vmul.f32 %v66, %v68
    %vm70 = vcmp.eq.f32.partialorder %v66, inf
    %v71 = vsel %vm70, %v66, %v69
    %vm72 = vcmp.eq.f32.partialorder %v66, 0.0
    %v73 = vand.u32 %v66, 2147483648
    %v74 = vsel %vm72, %v73, %v71
    %v75 = vrsqrt.pop %v67
    %v76 = vmul.f32 %v67, %v75
    %vm77 = vcmp.eq.f32.partialorder %v67, inf
    %v78 = vsel %vm77, %v67, %v76
    %vm79 = vcmp.eq.f32.partialorder %v67, 0.0
    %v80 = vand.u32 %v67, 2147483648
    %v81 = vsel %vm79, %v80, %v78
    %v82 = vadd.f32 %v74, 1e-06
    %v83 = vadd.f32 %v81, 1e-06
    %v84 = vrcp.pop %v82
    %v85 = vmul.f32 1.0, %v84
    %v86 = vrcp.pop %v83
    %v87 = vmul.f32 1.0, %v86
    %v88 = vld [vmem:[%s1] sm:$0x1]
    %v89 = vmul.f32 %v58, %v85
    %v90 = vmul.f32 %v59, %v87
    %v92 = vlaneseq
    %v93 = vshrl.u32 %v92, 7
    %v94 = vsub.s32 0, %v93
    %v95 = vrot.slane %v88, %v94
    %v97 = vmul.f32 %v95, %v89
    %v98 = vmul.f32 %v95, %v90
    %v99 = vld [vmem:[%s2] sm:$0x1]
    %v101 = vlaneseq
    %v102 = vshrl.u32 %v101, 7
    %v103 = vsub.s32 0, %v102
    %v104 = vrot.slane %v99, %v103
    %v106 = vadd.f32 %v97, %v104
    %v107 = vadd.f32 %v98, %v104
    %v108 = vld [vmem:[#allocation5] sm:$0xff]
    %v109 = vld [vmem:[#allocation5 + $0x8] sm:$0xff]
    %v110 = vld [vmem:[#allocation5 + $0x10] sm:$0xff]
    %v111 = vld [vmem:[#allocation5 + $0x18] sm:$0xff]
    %v112 = vld [vmem:[#allocation5 + $0x20] sm:$0xff]
    %v113 = vld [vmem:[#allocation5 + $0x28] sm:$0xff]
    %v114 = vld [vmem:[#allocation5 + $0x30] sm:$0xff]
    %v115 = vld [vmem:[#allocation5 + $0x38] sm:$0xff]
    %v116 = vld [vmem:[#allocation5 + $0x40] sm:$0xff]
    %v117 = vld [vmem:[#allocation5 + $0x48] sm:$0xff]
    %v118 = vld [vmem:[#allocation5 + $0x50] sm:$0xff]
    %v119 = vld [vmem:[#allocation5 + $0x58] sm:$0xff]
    %v120 = vld [vmem:[#allocation5 + $0x60] sm:$0xff]
    %v121 = vld [vmem:[#allocation5 + $0x68] sm:$0xff]
    %v122 = vld [vmem:[#allocation5 + $0x70] sm:$0xff]
    %v123 = vld [vmem:[#allocation5 + $0x78] sm:$0xff]
    %v124 = vld [vmem:[%s4] sm:$0x1]
    %v126 = vlaneseq
    %v127 = vshrl.u32 %v126, 7
    %v128 = vsub.s32 0, %v127
    %v129 = vrot.slane %v124, %v128
    %131 = vmatprep.subr.mxu0 0.0
    %132 = vmatpush1.msra.mxu0 %v108
    %133 = vmatprep.subr.mxu0 0.0
    %134 = vmatpush1.msra.mxu0 %v109
    %135 = vmatprep.subr.mxu0 0.0
    %136 = vmatpush1.msra.mxu0 %v110
    %137 = vmatprep.subr.mxu0 0.0
    %138 = vmatpush1.msra.mxu0 %v111
    %139 = vmatprep.subr.mxu0 0.0
    %140 = vmatpush1.msra.mxu0 %v112
    %141 = vmatprep.subr.mxu0 0.0
    %142 = vmatpush1.msra.mxu0 %v113
    %143 = vmatprep.subr.mxu0 0.0
    %144 = vmatpush1.msra.mxu0 %v114
    %145 = vmatprep.subr.mxu0 0.0
    %146 = vmatpush1.msra.mxu0 %v115
    %147 = vmatprep.subr.mxu0 0.0
    %148 = vmatpush1.msra.mxu0 %v116
    %149 = vmatprep.subr.mxu0 0.0
    %150 = vmatpush1.msra.mxu0 %v117
    %151 = vmatprep.subr.mxu0 0.0
    %152 = vmatpush1.msra.mxu0 %v118
    %153 = vmatprep.subr.mxu0 0.0
    %154 = vmatpush1.msra.mxu0 %v119
    %155 = vmatprep.subr.mxu0 0.0
    %156 = vmatpush1.msra.mxu0 %v120
    %157 = vmatprep.subr.mxu0 0.0
    %158 = vmatpush1.msra.mxu0 %v121
    %159 = vmatprep.subr.mxu0 0.0
    %160 = vmatpush1.msra.mxu0 %v122
    %161 = vmatprep.subr.mxu0 0.0
    %162 = vmatpush1.msra.mxu0 %v123
    %163 = vmatprep.subr.mxu0 0.0
    %164 = vmatpush1.msra.mxu0 0.0
    %165 = vmatprep.subr.mxu0 0.0
    %166 = vmatpush1.msra.mxu0 0.0
    %167 = vmatprep.subr.mxu0 0.0
    %168 = vmatpush1.msra.mxu0 0.0
    %169 = vmatprep.subr.mxu0 0.0
    %170 = vmatpush1.msra.mxu0 0.0
    %171 = vmatprep.subr.mxu0 0.0
    %172 = vmatpush1.msra.mxu0 0.0
    %173 = vmatprep.subr.mxu0 0.0
    %174 = vmatpush1.msra.mxu0 0.0
    %175 = vmatprep.subr.mxu0 0.0
    %176 = vmatpush1.msra.mxu0 0.0
    %177 = vmatprep.subr.mxu0 0.0
    %178 = vmatpush1.msra.mxu0 0.0
    %179 = vmatprep.subr.mxu0 0.0
    %180 = vmatpush1.msra.mxu0 0.0
    %181 = vmatprep.subr.mxu0 0.0
    %182 = vmatpush1.msra.mxu0 0.0
    %183 = vmatprep.subr.mxu0 0.0
    %184 = vmatpush1.msra.mxu0 0.0
    %185 = vmatprep.subr.mxu0 0.0
    %186 = vmatpush1.msra.mxu0 0.0
    %187 = vmatprep.subr.mxu0 0.0
    %188 = vmatpush1.msra.mxu0 0.0
    %189 = vmatprep.subr.mxu0 0.0
    %190 = vmatpush1.msra.mxu0 0.0
    %191 = vmatprep.subr.mxu0 0.0
    %192 = vmatpush1.msra.mxu0 0.0
    %193 = vmatprep.subr.mxu0 0.0
    %194 = vmatpush1.msra.mxu0 0.0
    %195 = vmatprep.mubr.f32.mxu0 0.0
    %196 = vmatmul.mubr.f32.gmra.mrb[0].mxu0 %v106
    %v197 = vpop.f32.mrb[0].mxu0
    %v198 = vadd.f32 %v129, %v197
    %v199 = vpop.f32.mrb[0].mxu0
    %200 = vmatprep.mubr.f32.mxu0 0.0
    %201 = vmatmul.mubr.f32.gmra.mrb[0].mxu0 %v107
    %v202 = vpop.f32.mrb[0].mxu0
    %v203 = vadd.f32 %v129, %v202
    %v204 = vpop.f32.mrb[0].mxu0
    %205 = vdwg.mxu0
    %v206 = vadd.f32 %v49, %v198
    %v207 = vadd.f32 %v50, %v203
    %208 = vst [vmem:[#allocation7] sm:$0xff] %v206
    %209 = vst [vmem:[#allocation7 + $0x8] sm:$0xff] %v207
    // Predicated region
    $region30: #{tpu_custom_call.1} parent=1 // pred_check
      _
    $region31: #{tpu_custom_call.1} parent=1 // pred_check_branch
      %211 = sbr.rel (0) target = $region33
    $region32: #{tpu_custom_call.1} parent=1 // pred_region
      %s213 = ssub.s32 256, 256
      %214 = vsyncadd [#allocation4], %s213
      %s215 = sshll.u32 [#allocation7], 4
      %s216 = int_to_ptr.vmem [resolvable:$true] %s215
      %221 = dma.vmem_to_hbm [thread:$0]  %s216, 256, %s5, [#allocation4], 128, 128, 8
    $region33: #{tpu_custom_call.1} parent=1 // pred_fallthru
      _
    // Predicated region
    $region34: #{tpu_custom_call.1} parent=1 // pred_check
      _
    $region35: #{tpu_custom_call.1} parent=1 // pred_check_branch
      %223 = sbr.rel (0) target = $region37
    $region36: #{tpu_custom_call.1} parent=1 // pred_region
      %224 = dma.done [#allocation4], 256
    $region37: #{tpu_custom_call.1} parent=1 // pred_fallthru
      _
    %225 = vsyncpa [#allocation3], 1
    %226 = vsyncpa [#allocation6], 1
    %227 = vsyncpa [#allocation4], 1

</llo_original>
